<compile_context>
chip_gen: v6e
topology: v6e:2x2x1
jax: 0.10.0
libtpu: 0.0.40
codegen_flags: <defaults>
</compile_context>

<pallas_src>
import functools

import numpy as np
import jax
import jax.numpy as jnp
from jax.experimental import pallas as pl
from jax.experimental.pallas import tpu as pltpu


# ----------------------------------------------------------------------------
# Pallas kernels
# ----------------------------------------------------------------------------
def _apply_act(y, act):
    if act == "relu":
        return jnp.maximum(y, 0.0)
    if act == "sigmoid":
        return jax.nn.sigmoid(y)
    return y


def _mm_kernel(a_ref, w_ref, b_ref, o_ref, *, act):
    """out[tm, N] = act(A[tm, K] @ W[K, N] + b[1, N])   (f32 accumulation)."""
    y = jnp.dot(a_ref[...], w_ref[...], preferred_element_type=jnp.float32)
    y = _apply_act(y + b_ref[...], act)
    o_ref[...] = y.astype(o_ref.dtype)


def _mm_t_kernel(at_ref, w_ref, b_ref, o_ref, *, act):
    """Lane-dense-output variant: out[N, tm] = act(W[N,K] @ At[K,tm] + b[N,1]).

    The patch matrix is fed already transposed (K, M), so this is a plain
    matmul (no in-kernel transpose of the big tile) and both the At loads and
    the output stores are lane-dense along the big M axis.  Used when N is
    tiny (4*3 channels in dec5/dec6) and M is huge."""
    y = jnp.dot(w_ref[...], at_ref[...], preferred_element_type=jnp.float32)
    y = _apply_act(y + b_ref[...], act)
    o_ref[...] = y.astype(o_ref.dtype)


def _pick_tm(m):
    """One full M tile unless M > 4096 (then 2+ steps; per-step buffers stay
    tiny, and >1 step only where it can matter for megacore)."""
    return m if m <= 4096 else 4096


def matmul_bias_act(a, w, b, act="none", out_dtype=jnp.bfloat16):
    """act(A @ W + b) on the MXU: A (M,K), W (K,N), b (N,).  bf16 in, f32 acc.

    grid = cdiv(M, tm); Pallas masks a tail tile (no cross-grid accumulation,
    so garbage tail rows can never reach a valid output row)."""
    M, K = a.shape
    N = w.shape[1]
    a = a.astype(jnp.bfloat16)
    w = w.astype(jnp.bfloat16)
    b = b.astype(jnp.float32).reshape(1, N)
    tm = _pick_tm(M)
    return pl.pallas_call(
        functools.partial(_mm_kernel, act=act),
        out_shape=jax.ShapeDtypeStruct((M, N), out_dtype),
        grid_spec=pltpu.PrefetchScalarGridSpec(
            num_scalar_prefetch=0,
            grid=(pl.cdiv(M, tm),),
            in_specs=[
                pl.BlockSpec((tm, K), lambda i: (i, 0)),
                pl.BlockSpec((K, N), lambda i: (0, 0)),
                pl.BlockSpec((1, N), lambda i: (0, 0)),
            ],
            out_specs=pl.BlockSpec((tm, N), lambda i: (i, 0)),
        ),
        compiler_params=pltpu.CompilerParams(dimension_semantics=("parallel",)),
    )(a, w, b)


def matmul_t_bias_act(a_t, w_t, b, act="none", out_dtype=jnp.bfloat16):
    """act(W @ At + b): At (K,M), W (N,K), b (N,) -> (N, M)  (lane-dense out)."""
    K, M = a_t.shape
    N = w_t.shape[0]
    a_t = a_t.astype(jnp.bfloat16)
    w_t = w_t.astype(jnp.bfloat16)
    b = b.astype(jnp.float32).reshape(N, 1)
    tm = _pick_tm(M)
    return pl.pallas_call(
        functools.partial(_mm_t_kernel, act=act),
        out_shape=jax.ShapeDtypeStruct((N, M), out_dtype),
        grid_spec=pltpu.PrefetchScalarGridSpec(
            num_scalar_prefetch=0,
            grid=(pl.cdiv(M, tm),),
            in_specs=[
                pl.BlockSpec((K, tm), lambda i: (0, i)),
                pl.BlockSpec((N, K), lambda i: (0, 0)),
                pl.BlockSpec((N, 1), lambda i: (0, 0)),
            ],
            out_specs=pl.BlockSpec((N, tm), lambda i: (0, i)),
        ),
        compiler_params=pltpu.CompilerParams(dimension_semantics=("parallel",)),
    )(a_t, w_t, b)


def _fused_kernel(x_ref, eps_ref,
                  we1_ref, be1_ref, we2_ref, be2_ref, we3_ref, be3_ref,
                  we4_ref, be4_ref, we5_ref, be5_ref,
                  w1_ref, b1_ref, wml_ref, bml_ref, w2_ref, b2_ref,
                  wd1_ref, bd1_ref,
                  mu_ref, lv_ref, d1_ref, *, latent_dim, n_pool, c_enc5):
    """enc1..enc5 + adaptive_avg_pool + fc1 + (fc_mu|fc_log_var) +
    reparameterize + fc2 + dec1(+relu), all VMEM-resident in one call."""
    bf16, f32 = jnp.bfloat16, jnp.float32

    def dense(h, w_ref, b_ref, relu):
        y = jnp.dot(h.astype(bf16), w_ref[...],
                    preferred_element_type=f32) + b_ref[...]
        return jnp.maximum(y, 0.0) if relu else y

    h = x_ref[...]                                    # (B, H*W*Cimg) bf16
    h = dense(h, we1_ref, be1_ref, relu=True)
    h = dense(h, we2_ref, be2_ref, relu=True)
    h = dense(h, we3_ref, be3_ref, relu=True)
    h = dense(h, we4_ref, be4_ref, relu=True)
    y5 = dense(h, we5_ref, be5_ref, relu=True)        # (B, n_pool*c_enc5)

    # adaptive_avg_pool2d(.,1): mean over the n_pool spatial positions.
    # Lane chunks are c_enc5-wide (multiple of 128) -> aligned static slices.
    feat = y5[:, 0:c_enc5]
    for p in range(1, n_pool):
        feat = feat + y5[:, p * c_enc5:(p + 1) * c_enc5]
    feat = feat * (1.0 / n_pool)

    hidden = dense(feat, w1_ref, b1_ref, relu=False)          # fc1 (no act)
    mulv = dense(hidden, wml_ref, bml_ref, relu=False)        # [mu | log_var]
    mu = mulv[:, :latent_dim]
    log_var = mulv[:, latent_dim:]
    z = mu + eps_ref[...] * jnp.exp(0.5 * log_var)            # reparameterize
    z = dense(z, w2_ref, b2_ref, relu=False)                  # fc2 (no act)
    d1 = dense(z, wd1_ref, bd1_ref, relu=True)                # dec1 + relu

    mu_ref[...] = mu
    lv_ref[...] = log_var
    d1_ref[...] = d1.astype(d1_ref.dtype)


def fused_encoder_latent_dec1(prep, x_flat, eps):
    b_sz = x_flat.shape[0]
    c_enc5 = prep["fc1"][0].shape[0]                    # 1024 (enc5 channels)
    n_pool = prep["enc5"][0].shape[1] // c_enc5         # enc5 spatial positions
    latent = prep["fc_mulv"][0].shape[1] // 2
    d1_n = prep["dec1"][0].shape[1]
    kern = functools.partial(_fused_kernel, latent_dim=latent,
                             n_pool=n_pool, c_enc5=c_enc5)
    return pl.pallas_call(
        kern,
        out_shape=(
            jax.ShapeDtypeStruct((b_sz, latent), jnp.float32),   # mu
            jax.ShapeDtypeStruct((b_sz, latent), jnp.float32),   # log_var
            jax.ShapeDtypeStruct((b_sz, d1_n), jnp.bfloat16),    # relu(dec1(z))
        ),
        compiler_params=pltpu.CompilerParams(
            vmem_limit_bytes=32 * 1024 * 1024),   # ~10 MB resident weights
    )(x_flat, eps,
      *prep["enc1"], *prep["enc2"], *prep["enc3"], *prep["enc4"], *prep["enc5"],
      *prep["fc1"], *prep["fc_mulv"], *prep["fc2"], *prep["dec1"])


# ----------------------------------------------------------------------------
# Plain-JAX glue for the decoder: NHWC im2col (layout plumbing only, no FLOPs)
# ----------------------------------------------------------------------------
def im2col_nhwc(x, kh, kw, stride, pad):
    """NHWC x -> (B*Ho*Wo, kh*kw*C) patches; feature order = (ky, kx, c)."""
    B, H, W, C = x.shape
    xp = jnp.pad(x, ((0, 0), (pad, pad), (pad, pad), (0, 0)))
    Ho = (H + 2 * pad - kh) // stride + 1
    Wo = (W + 2 * pad - kw) // stride + 1
    cols = []
    for i in range(kh):
        for j in range(kw):
            cols.append(xp[:, i:i + (Ho - 1) * stride + 1:stride,
                           j:j + (Wo - 1) * stride + 1:stride, :])
    p = jnp.concatenate(cols, axis=-1)               # (B, Ho, Wo, kh*kw*C)
    return p.reshape(B * Ho * Wo, kh * kw * C), Ho, Wo


def im2col_nhwc_t(x, kh, kw, stride, pad):
    """Same patches but transposed: (kh*kw*C, B*Ho*Wo), for the lane-dense
    transposed-output matmul (no in-kernel transpose needed)."""
    B, H, W, C = x.shape
    xp = jnp.pad(x, ((0, 0), (pad, pad), (pad, pad), (0, 0)))
    Ho = (H + 2 * pad - kh) // stride + 1
    Wo = (W + 2 * pad - kw) // stride + 1
    cols = []
    for i in range(kh):
        for j in range(kw):
            cols.append(xp[:, i:i + (Ho - 1) * stride + 1:stride,
                           j:j + (Wo - 1) * stride + 1:stride, :])
    p = jnp.stack(cols, axis=0)                      # (kh*kw, B, Ho, Wo, C)
    p = p.transpose(0, 4, 1, 2, 3)                   # (kh*kw, C, B, Ho, Wo)
    return p.reshape(kh * kw * C, B * Ho * Wo), Ho, Wo


def conv_transpose2d_nhwc(x, w_pk, b4, k, act, transpose_out=False,
                          out_layout="nhwc", out_dtype=jnp.bfloat16):
    """nn.ConvTranspose2d(kernel=k, stride=2, padding=0) via phase packing.

    The four output phases (oy%2, ox%2) of a stride-2 transposed conv are each
    a stride-1 conv of the UN-dilated input with a 2x2 sub-kernel, so all four
    phases come from ONE matmul: patches = im2col(x, 2x2, stride 1, pad 1)
    against a packed (4*Cin, 4*Cout) weight.  The interleave back to (Ho, Wo)
    is reshape/transpose glue on a tiny tensor."""
    B, H, W, _ = x.shape
    Ho, Wo = (H - 1) * 2 + k, (W - 1) * 2 + k

    if not transpose_out:
        patches, H1, W1 = im2col_nhwc(x, 2, 2, stride=1, pad=1)
        n_out = w_pk.shape[1] // 4
        y = matmul_bias_act(patches, w_pk, b4, act=act, out_dtype=out_dtype)
        y = y.reshape(B, H1, W1, 2, 2, n_out).transpose(0, 1, 3, 2, 4, 5)
        return y.reshape(B, 2 * H1, 2 * W1, n_out)[:, :Ho, :Wo, :]

    patches_t, H1, W1 = im2col_nhwc_t(x, 2, 2, stride=1, pad=1)
    n_out = w_pk.shape[0] // 4
    yt = matmul_t_bias_act(patches_t, w_pk, b4, act=act,
                           out_dtype=out_dtype)          # (4*O, B*H1*W1)
    yt = yt.reshape(2, 2, n_out, B, H1, W1)              # (py,px,o,b,qy,qx)
    if out_layout == "nchw":
        y = yt.transpose(3, 2, 4, 0, 5, 1).reshape(B, n_out, 2 * H1, 2 * W1)
        return y[:, :, :Ho, :Wo]
    y = yt.transpose(3, 4, 0, 5, 1, 2).reshape(B, 2 * H1, 2 * W1, n_out)
    return y[:, :Ho, :Wo, :]


# ----------------------------------------------------------------------------
# Parameters: init + one-time repacking (numpy, outside the jitted forward)
# ----------------------------------------------------------------------------
def init_params(key, init_channels=8, image_channels=3, latent_dim=32):
    ic = init_channels
    shapes = {
        "enc1": ((ic, image_channels, 4, 4), (ic,)),
        "enc2": ((ic * 2, ic, 4, 4), (ic * 2,)),
        "enc3": ((ic * 4, ic * 2, 4, 4), (ic * 4,)),
        "enc4": ((ic * 8, ic * 4, 4, 4), (ic * 8,)),
        "enc5": ((1024, ic * 8, 4, 4), (1024,)),
        "fc1": ((2048, 1024), (2048,)),
        "fc_mu": ((latent_dim, 2048), (latent_dim,)),
        "fc_log_var": ((latent_dim, 2048), (latent_dim,)),
        "fc2": ((1024, latent_dim), (1024,)),
        # ConvTranspose2d weights are (in, out, kh, kw)
        "dec1": ((1024, ic * 8, 3, 3), (ic * 8,)),
        "dec2": ((ic * 8, ic * 4, 3, 3), (ic * 4,)),
        "dec3": ((ic * 4, ic * 2, 3, 3), (ic * 2,)),
        "dec4": ((ic * 2, ic, 3, 3), (ic,)),
        "dec5": ((ic, image_channels, 3, 3), (image_channels,)),
        "dec6": ((image_channels, image_channels, 4, 4), (image_channels,)),
    }
    params = {}
    for name, (ws, bs) in shapes.items():
        key, kw_, kb_ = jax.random.split(key, 3)
        params[name] = (0.05 * jax.random.normal(kw_, ws, jnp.float32),
                        0.05 * jax.random.normal(kb_, bs, jnp.float32))
    return params


def pack_conv_dense(w, b, hin, win, stride, pad):
    """nn.Conv2d weight (Cout,Cin,kh,kw) on a known (hin,win) input ->
    one dense matmul: rows (hi,wi,ci) [ci fastest], cols (ho,wo,co) [co
    fastest].  Zero MACs are structural zeros in the packed matrix; for the
    layers that dominate weight bytes (enc5) there is no inflation at all."""
    w = np.asarray(w, np.float32)
    b = np.asarray(b, np.float32)
    cout, cin, kh, kw = w.shape
    hout = (hin + 2 * pad - kh) // stride + 1
    wout = (win + 2 * pad - kw) // stride + 1
    wp = np.zeros((hin, win, cin, hout, wout, cout), np.float32)
    for ho in range(hout):
        for wo in range(wout):
            for ky in range(kh):
                for kx in range(kw):
                    hi = ho * stride + ky - pad
                    wi = wo * stride + kx - pad
                    if 0 <= hi < hin and 0 <= wi < win:
                        wp[hi, wi, :, ho, wo, :] = w[:, :, ky, kx].T
    wp = wp.reshape(hin * win * cin, hout * wout * cout)
    bt = np.tile(b, hout * wout).reshape(1, -1)
    return (jnp.asarray(wp, jnp.bfloat16), jnp.asarray(bt, jnp.float32),
            (hout, wout))


def pack_deconv_weight(wt):
    """ConvTranspose2d weight (Cin,Cout,kh,kw), stride 2 -> (4*Cin, 4*Cout).

    Row order (dy,dx,cin) [cin fastest] matches the 2x2/stride-1/pad-1 im2col
    feature order; column order (py,px,cout) [cout fastest]."""
    wt = np.asarray(wt, np.float32)
    cin, cout, kh, kw = wt.shape
    K = np.zeros((2, 2, cin, 2, 2, cout), np.float32)
    for dy in range(2):
        for dx in range(2):
            for py in range(2):
                for px in range(2):
                    ky, kx = 2 * (1 - dy) + py, 2 * (1 - dx) + px
                    if ky < kh and kx < kw:
                        K[dy, dx, :, py, px, :] = wt[:, :, ky, kx]
    return K.reshape(4 * cin, 4 * cout)


def prepare_params(params, image_hw=(16, 16)):
    """One-time weight packing (dense-conv, deconv phase-pack, fc concat),
    transposes and bf16 casts.  image_hw is the encoder input spatial size."""
    bf16, f32 = jnp.bfloat16, jnp.float32
    prep = {}

    h, w = image_hw
    for name in ("enc1", "enc2", "enc3", "enc4", "enc5"):
        W, b = params[name]
        wp, bp, (h, w) = pack_conv_dense(W, b, h, w, stride=2, pad=2)
        prep[name] = (wp, bp)

    w1, b1 = params["fc1"]
    prep["fc1"] = (jnp.asarray(w1.T, bf16),
                   jnp.asarray(b1, f32).reshape(1, -1))
    wmu, bmu = params["fc_mu"]
    wlv, blv = params["fc_log_var"]
    prep["fc_mulv"] = (jnp.concatenate([wmu.T, wlv.T], axis=1).astype(bf16),
                       jnp.concatenate([bmu, blv]).reshape(1, -1).astype(f32))
    w2, b2 = params["fc2"]
    prep["fc2"] = (jnp.asarray(w2.T, bf16),
                   jnp.asarray(b2, f32).reshape(1, -1))

    # dec1: 1x1 spatial input -> plain (Cin, kh*kw*Cout) matmul, cols (ky,kx,o)
    wd, bd = params["dec1"]
    cin, co, kh, kw = wd.shape
    prep["dec1"] = (jnp.asarray(wd.transpose(0, 2, 3, 1).reshape(cin, kh * kw * co),
                                bf16),
                    jnp.tile(jnp.asarray(bd, f32), kh * kw).reshape(1, -1))

    for name in ("dec2", "dec3", "dec4", "dec5", "dec6"):
        wt, b = params[name]
        wpk = pack_deconv_weight(wt)
        if name in ("dec5", "dec6"):        # lane-dense transposed-output layers
            wpk = wpk.T
        prep[name] = (jnp.asarray(wpk, bf16),
                      jnp.tile(jnp.asarray(b, f32), 4))
    return prep


# ----------------------------------------------------------------------------
# Forward pass
# ----------------------------------------------------------------------------
def conv_vae_forward(prep, x_nchw, eps):
    """Matches ConvVAE.forward: returns (reconstruction [NCHW], mu, log_var).
    eps is the reparameterization noise (torch.randn_like is external here)."""
    B = x_nchw.shape[0]
    x_flat = x_nchw.transpose(0, 2, 3, 1).reshape(B, -1).astype(jnp.bfloat16)
    if x_flat.shape[1] != prep["enc1"][0].shape[0]:
        raise ValueError("input spatial size does not match prepare_params()")

    # enc1..enc5 + pool + fc1 + fc_mu/fc_log_var + reparam + fc2 + dec1: 1 call
    mu, log_var, d1 = fused_encoder_latent_dec1(prep, x_flat, eps)

    c1 = prep["dec2"][0].shape[0] // 4           # dec1 out channels
    k1 = int(round((prep["dec1"][0].shape[1] // c1) ** 0.5))   # dec1 kernel (3)
    h = d1.reshape(B, k1, k1, c1)                # NHWC

    for name in ("dec2", "dec3", "dec4"):
        w_pk, b4 = prep[name]
        h = conv_transpose2d_nhwc(h, w_pk, b4, k=3, act="relu")
    w_pk, b4 = prep["dec5"]
    h = conv_transpose2d_nhwc(h, w_pk, b4, k=3, act="relu",
                              transpose_out=True, out_layout="nhwc")
    w_pk, b4 = prep["dec6"]
    recon = conv_transpose2d_nhwc(h, w_pk, b4, k=4, act="sigmoid",
                                  transpose_out=True, out_layout="nchw",
                                  out_dtype=jnp.float32)
    return recon, mu, log_var


# ----------------------------------------------------------------------------
# Plain-XLA references (used only for correctness checks in __main__)
# ----------------------------------------------------------------------------
def _ref_conv2d(x, w, b, stride, pad):
    y = jax.lax.conv_general_dilated(
        x, w, (stride, stride), [(pad, pad), (pad, pad)],
        dimension_numbers=("NCHW", "OIHW", "NCHW"))
    return y + b.reshape(1, -1, 1, 1)


def _ref_tconv2d(x, wt, b, stride):
    kh, kw = wt.shape[2], wt.shape[3]
    wk = jnp.flip(wt, (2, 3)).transpose(1, 0, 2, 3)
    y = jax.lax.conv_general_dilated(
        x, wk, (1, 1), [(kh - 1, kh - 1), (kw - 1, kw - 1)],
        lhs_dilation=(stride, stride),
        dimension_numbers=("NCHW", "OIHW", "NCHW"))
    return y + b.reshape(1, -1, 1, 1)


def ref_forward(params, x, eps):
    h = x
    for name in ("enc1", "enc2", "enc3", "enc4", "enc5"):
        w, b = params[name]
        h = jax.nn.relu(_ref_conv2d(h, w, b, 2, 2))
    feat = jnp.mean(h, axis=(2, 3))
    hidden = feat @ params["fc1"][0].T + params["fc1"][1]
    mu = hidden @ params["fc_mu"][0].T + params["fc_mu"][1]
    lv = hidden @ params["fc_log_var"][0].T + params["fc_log_var"][1]
    z = mu + eps * jnp.exp(0.5 * lv)
    z = z @ params["fc2"][0].T + params["fc2"][1]
    h = z.reshape(-1, 1024, 1, 1)
    for name in ("dec1", "dec2", "dec3", "dec4", "dec5"):
        wt, b = params[name]
        h = jax.nn.relu(_ref_tconv2d(h, wt, b, 2))
    wt, b = params["dec6"]
    return jax.nn.sigmoid(_ref_tconv2d(h, wt, b, 2)), mu, lv


def _rel_err(a, b):
    a = jnp.asarray(a, jnp.float32)
    b = jnp.asarray(b, jnp.float32)
    return float(jnp.linalg.norm(a - b) / (jnp.linalg.norm(b) + 1e-8))


# ----------------------------------------------------------------------------
if __name__ == "__main__":
    key = jax.random.PRNGKey(0)
    k_params, k_input, k_noise, k_u1, k_u2, k_u3, k_u4 = jax.random.split(key, 7)

    INIT_CH, IMG_CH, LATENT = 8, 3, 32
    params = init_params(k_params, INIT_CH, IMG_CH, LATENT)
    prep = prepare_params(params, image_hw=(16, 16))

    x = jax.random.normal(k_input, (2, IMG_CH, 16, 16), jnp.float32)
    eps = jax.random.normal(k_noise, (2, LATENT), jnp.float32)

    # ---- unit check: dense-packed conv (pure XLA, validates the packer) -----
    xu = jax.random.normal(k_u1, (2, 5, 9, 9), jnp.float32)
    wu = 0.1 * jax.random.normal(k_u2, (7, 5, 4, 4), jnp.float32)
    bu = 0.1 * jax.random.normal(k_u3, (7,), jnp.float32)
    ref = _ref_conv2d(xu, wu, bu, 2, 2)
    wp, bp, (ho, wo) = pack_conv_dense(wu, bu, 9, 9, 2, 2)
    got = (xu.transpose(0, 2, 3, 1).reshape(2, -1) @ wp.astype(jnp.float32)
           + bp).reshape(2, ho, wo, 7).transpose(0, 3, 1, 2)
    assert _rel_err(got, ref) < 3e-2, "dense-packed conv mismatch"

    # ---- unit checks of the Pallas transposed-conv paths --------------------
    xu = jax.random.normal(k_u1, (2, 6, 4, 4), jnp.float32)
    wu = 0.1 * jax.random.normal(k_u2, (6, 5, 3, 3), jnp.float32)
    bu = 0.1 * jax.random.normal(k_u3, (5,), jnp.float32)
    ref = jax.nn.relu(_ref_tconv2d(xu, wu, bu, 2))
    wpk = jnp.asarray(pack_deconv_weight(wu), jnp.bfloat16)
    b4 = jnp.tile(bu, 4)
    x_nhwc = xu.transpose(0, 2, 3, 1).astype(jnp.bfloat16)
    got = conv_transpose2d_nhwc(x_nhwc, wpk, b4, k=3, act="relu")
    assert _rel_err(got.transpose(0, 3, 1, 2), ref) < 3e-2, "tconv k3 mismatch"
    got = conv_transpose2d_nhwc(x_nhwc, wpk.T, b4, k=3, act="relu",
                                transpose_out=True, out_layout="nhwc")
    assert _rel_err(got.transpose(0, 3, 1, 2), ref) < 3e-2, "tconv k3(T) mismatch"

    wu = 0.1 * jax.random.normal(k_u4, (6, 5, 4, 4), jnp.float32)
    ref = _ref_tconv2d(xu, wu, bu, 2)
    wpk = jnp.asarray(pack_deconv_weight(wu), jnp.bfloat16)
    got = conv_transpose2d_nhwc(x_nhwc, wpk.T, jnp.tile(bu, 4), k=4, act="none",
                                transpose_out=True, out_layout="nchw",
                                out_dtype=jnp.float32)
    assert _rel_err(got, ref) < 3e-2, "tconv k4(T) mismatch"

    # ---- full forward --------------------------------------------------------
    fwd = jax.jit(conv_vae_forward)
    recon, mu, log_var = fwd(prep, x, eps)
    jax.block_until_ready((recon, mu, log_var))

    assert recon.shape == (2, IMG_CH, 128, 128)
    assert mu.shape == (2, LATENT) and log_var.shape == (2, LATENT)
    assert bool(jnp.all(jnp.isfinite(recon)))

    # end-to-end check against a plain-XLA f32 reference (bf16 tolerance)
    r_recon, r_mu, r_lv = ref_forward(params, x, eps)
    assert _rel_err(mu, r_mu) < 0.1, "mu mismatch vs reference"
    assert _rel_err(log_var, r_lv) < 0.1, "log_var mismatch vs reference"
    assert float(jnp.max(jnp.abs(recon - r_recon))) < 3e-2, "recon mismatch"

    print("KERNEL_OK")
</pallas_src>

<mosaic_0001>
module attributes {stable_mosaic.version = 11 : i64} {
  func.func @_mm_kernel(%arg0: i32, %arg1: memref<50x24xbf16, #tpu.memory_space<vmem>>, %arg2: memref<24x20xbf16, #tpu.memory_space<vmem>>, %arg3: memref<1x20xf32, #tpu.memory_space<vmem>>, %arg4: memref<50x20xbf16, #tpu.memory_space<vmem>>) attributes {dimension_semantics = [#tpu.dimension_semantics<parallel>], iteration_bounds = array<i64: 1>, scalar_prefetch = 0 : i64, scratch_operands = 0 : i64, tpu.core_type = #tpu.core_type<tc>, window_params = [{transform_indices = @transform_0, window_bounds = array<i64: 50, 24>}, {pipeline_mode = #tpu.pipeline_mode<synchronous>, transform_indices = @transform_1, window_bounds = array<i64: 24, 20>}, {pipeline_mode = #tpu.pipeline_mode<synchronous>, transform_indices = @transform_2, window_bounds = array<i64: 1, 20>}, {transform_indices = @transform_3, window_bounds = array<i64: 50, 20>}]} {
    %c0 = arith.constant 0 : index
    %c0_0 = arith.constant 0 : index
    %0 = vector.load %arg1[%c0, %c0_0] : memref<50x24xbf16, #tpu.memory_space<vmem>>, vector<50x24xbf16>
    %c0_1 = arith.constant 0 : index
    %c0_2 = arith.constant 0 : index
    %1 = vector.load %arg2[%c0_1, %c0_2] : memref<24x20xbf16, #tpu.memory_space<vmem>>, vector<24x20xbf16>
    %cst = arith.constant dense<0.000000e+00> : vector<50x20xf32>
    %2 = tpu.matmul %0, %1, %cst {dimension_numbers = #tpu.dot_dimension_numbers<[1], [0], [0], [1], [0, 0, 1, 1], [], []>} : vector<50x24xbf16>, vector<24x20xbf16>, vector<50x20xf32> -> vector<50x20xf32>
    %c0_3 = arith.constant 0 : index
    %c0_4 = arith.constant 0 : index
    %3 = vector.load %arg3[%c0_3, %c0_4] : memref<1x20xf32, #tpu.memory_space<vmem>>, vector<1x20xf32>
    %4 = vector.broadcast %3 : vector<1x20xf32> to vector<50x20xf32>
    %5 = arith.addf %2, %4 : vector<50x20xf32>
    %cst_5 = arith.constant 0.000000e+00 : f32
    %6 = vector.broadcast %cst_5 : f32 to vector<50x20xf32>
    %7 = arith.maximumf %5, %6 : vector<50x20xf32>
    %8 = arith.truncf %7 : vector<50x20xf32> to vector<50x20xbf16>
    %c0_6 = arith.constant 0 : index
    %c0_7 = arith.constant 0 : index
    %9 = vector.load %arg4[%c0_6, %c0_7] : memref<50x20xbf16, #tpu.memory_space<vmem>>, vector<50x20xbf16>
    tpu.vector_store %arg4[%c0_6, %c0_7], %8 {strides = array<i32>} : memref<50x20xbf16, #tpu.memory_space<vmem>>, vector<50x20xbf16>,
    return
  }
  func.func @transform_0(%arg0: i32) -> (i32, i32) {
    %c0_i32 = arith.constant 0 : i32
    %c0_i32_0 = arith.constant 0 : i32
    return %arg0, %c0_i32 : i32, i32
  }
  func.func @transform_1(%arg0: i32) -> (i32, i32) {
    %c0_i32 = arith.constant 0 : i32
    %c0_i32_0 = arith.constant 0 : i32
    %c0_i32_1 = arith.constant 0 : i32
    return %c0_i32, %c0_i32_0 : i32, i32
  }
  func.func @transform_2(%arg0: i32) -> (i32, i32) {
    %c0_i32 = arith.constant 0 : i32
    %c0_i32_0 = arith.constant 0 : i32
    %c0_i32_1 = arith.constant 0 : i32
    return %c0_i32, %c0_i32_0 : i32, i32
  }
  func.func @transform_3(%arg0: i32) -> (i32, i32) {
    %c0_i32 = arith.constant 0 : i32
    %c0_i32_0 = arith.constant 0 : i32
    return %arg0, %c0_i32 : i32, i32
  }
}

</mosaic_0001>

<llo_original>
// kernel: tpu_custom_call.1
$region0: #{tpu_custom_call.1}
  #allocation0 [shape = 'u32[]', space=smem, size = 0x4, offset = 0x4, fixed_abs, tag = 'smem constant byte address 0x4 - core index']
  #allocation1 [shape = 'u32[144,128]{1,0:T(1,128)}', space=vmem, size = 0x12000, scoped, tag = 'internal scratch']
  %s0 = inlined_call_operand.vmem [shape: bf16[50,24], index: 0, kind: input, shape index: {}]
  %s1 = inlined_call_operand.vmem [shape: bf16[24,20], index: 1, kind: input, shape index: {}]
  %s2 = inlined_call_operand.vmem [shape: f32[1,20], index: 2, kind: input, shape index: {}]
  %s3 = inlined_call_operand.vmem [shape: bf16[50,20], index: 3, kind: output, shape index: {}]
  %s4 = sld [smem:[#allocation0]]
  $region22: #{tpu_custom_call.1} parent=0
    _
  %s6 = ssub.s32 1, %s4
  %s7 = scalar_select 0, %s6, %s4
  // Predicated region
  $region2: #{tpu_custom_call.1} parent=0 // pred_check
    _
  $region3: #{tpu_custom_call.1} parent=0 // pred_check_branch
    %9 = sbr.rel (0) target = $region5
  $region4: #{tpu_custom_call.1} parent=0 // pred_region
    _
  $region5: #{tpu_custom_call.1} parent=0 // pred_fallthru
    _
  // Predicated region
  $region6: #{tpu_custom_call.1} parent=0 // pred_check
    _
  $region7: #{tpu_custom_call.1} parent=0 // pred_check_branch
    %11 = sbr.rel (0) target = $region9
  $region8: #{tpu_custom_call.1} parent=0 // pred_region
    _
  $region9: #{tpu_custom_call.1} parent=0 // pred_fallthru
    _
  // Predicated region
  $region10: #{tpu_custom_call.1} parent=0 // pred_check
    _
  $region11: #{tpu_custom_call.1} parent=0 // pred_check_branch
    %13 = sbr.rel (0) target = $region13
  $region12: #{tpu_custom_call.1} parent=0 // pred_region
    _
  $region13: #{tpu_custom_call.1} parent=0 // pred_fallthru
    _
  %v15 = vld [vmem:[%s0] sm:$0xf]
  %v16 = vld [vmem:[%s0 + $0x4] sm:$0xf]
  %v17 = vld [vmem:[%s0 + $0x8] sm:$0xf]
  %v18 = vld [vmem:[%s0 + $0xc] sm:$0xf]
  %v19 = vld [vmem:[%s0 + $0x10] sm:$0xf]
  %v20 = vld [vmem:[%s0 + $0x14] sm:$0xf]
  %v21 = vld [vmem:[%s0 + $0x18] sm:$0x1]
  %v22 = vld [vmem:[%s1] sm:$0xf]
  %v23 = vld [vmem:[%s1 + $0x4] sm:$0xf]
  %v24 = vld [vmem:[%s1 + $0x8] sm:$0xf]
  %v25 = vld [vmem:[%s2] sm:$0x1]
  %v27 = vlaneseq
  %v28 = vshrl.u32 %v27, 7
  %v29 = vsub.s32 0, %v28
  %v30 = vrot.slane %v25, %v29
  %v39 = vunpack.c.l.b16 %v15
  %v40 = vunpack.c.l.b16 %v16
  %v41 = vunpack.c.l.b16 %v17
  %v42 = vunpack.c.l.b16 %v18
  %v43 = vunpack.c.l.b16 %v19
  %v44 = vunpack.c.l.b16 %v20
  %v45 = vunpack.c.l.b16 %v21
  %v46 = vpack.c.b16 %v40, %v39
  %v47 = vpack.c.b16 %v42, %v41
  %v48 = vpack.c.b16 %v44, %v43
  %v49 = vpack.c.b16 %v45, %v45
  %v53 = vunpack.c.l.b16 %v22
  %v54 = vunpack.c.l.b16 %v23
  %v55 = vunpack.c.l.b16 %v24
  %v56 = vpack.c.b16 %v54, %v53
  %v57 = vpack.c.b16 %v55, %v55
  %vm59 = vcmask 195584
  %v61 = vsel %vm59, %v46, 0
  %v64 = vsel %vm59, %v47, 0
  %v67 = vsel %vm59, %v48, 0
  %v70 = vsel %vm59, %v49, 0
  %vm72 = vcmask 1043456
  %v74 = vsel %vm72, %v57, 0
  %76 = vmatprep.subr.bf16.mxu0 0
  %77 = vmatpush1.bf16.msra.mxu0 0
  %78 = vmatprep.subr.bf16.mxu0 0
  %79 = vmatpush1.bf16.msra.mxu0 0
  %80 = vmatprep.subr.bf16.mxu0 0
  %81 = vmatpush1.bf16.msra.mxu0 0
  %82 = vmatprep.subr.bf16.mxu0 0
  %83 = vmatpush1.bf16.msra.mxu0 0
  %84 = vmatprep.subr.bf16.mxu0 0
  %85 = vmatpush1.bf16.msra.mxu0 0
  %86 = vmatprep.subr.bf16.mxu0 0
  %87 = vmatpush1.bf16.msra.mxu0 0
  %88 = vmatprep.subr.bf16.mxu0 0
  %89 = vmatpush1.bf16.msra.mxu0 %v74
  %90 = vmatprep.subr.bf16.mxu0 0
  %91 = vmatpush1.bf16.msra.mxu0 %v56
  %92 = vmatprep.subr.bf16.mxu0 0
  %93 = vmatpush2.bf16.msra.mxu0 0
  %94 = vmatprep.subr.bf16.mxu0 0
  %95 = vmatpush2.bf16.msra.mxu0 0
  %96 = vmatprep.subr.bf16.mxu0 0
  %97 = vmatpush2.bf16.msra.mxu0 0
  %98 = vmatprep.subr.bf16.mxu0 0
  %99 = vmatpush2.bf16.msra.mxu0 0
  %100 = vmatprep.subr.bf16.mxu0 0
  %101 = vmatpush2.bf16.msra.mxu0 0
  %102 = vmatprep.subr.bf16.mxu0 0
  %103 = vmatpush2.bf16.msra.mxu0 0
  %104 = vmatprep.subr.bf16.mxu0 0
  %105 = vmatpush2.bf16.msra.mxu0 0
  %106 = vmatprep.subr.bf16.mxu0 0
  %107 = vmatpush2.bf16.msra.mxu0 0
  %108 = vmatprep.mubr.bf16.mxu0 0
  %109 = vmatmul.mubr.bf16.gmra.mxu0 %v61
  %v110 = vpop.f32.mrf.mxu0
  %v111 = vadd.f32 %v30, %v110
  %v112 = vpop.f32.mrf.mxu0
  %v113 = vpop.f32.mrf.mxu0
  %v114 = vadd.f32 %v30, %v113
  %v115 = vpop.f32.mrf.mxu0
  %116 = vmatprep.mubr.bf16.mxu0 0
  %117 = vmatmul.mubr.bf16.gmra.mxu0 %v64
  %v118 = vpop.f32.mrf.mxu0
  %v119 = vadd.f32 %v30, %v118
  %v120 = vpop.f32.mrf.mxu0
  %v121 = vpop.f32.mrf.mxu0
  %v122 = vadd.f32 %v30, %v121
  %v123 = vpop.f32.mrf.mxu0
  %124 = vmatprep.mubr.bf16.mxu0 0
  %125 = vmatmul.mubr.bf16.gmra.mxu0 %v67
  %v126 = vpop.f32.mrf.mxu0
  %v127 = vadd.f32 %v30, %v126
  %v128 = vpop.f32.mrf.mxu0
  %v129 = vpop.f32.mrf.mxu0
  %v130 = vadd.f32 %v30, %v129
  %v131 = vpop.f32.mrf.mxu0
  %132 = vmatprep.mubr.bf16.mxu0 0
  %133 = vmatmul.mubr.bf16.gmra.mxu0 %v70
  %v134 = vpop.f32.mrf.mxu0
  %v135 = vadd.f32 %v30, %v134
  %v136 = vpop.f32.mrf.mxu0
  %v137 = vpop.f32.mrf.mxu0
  %v138 = vpop.f32.mrf.mxu0
  %139 = vdwg.mxu0
  %v140 = vmax.f32 %v111, 0.0
  %v141 = vmax.f32 %v114, 0.0
  %v142 = vmax.f32 %v119, 0.0
  %v143 = vmax.f32 %v122, 0.0
  %v144 = vmax.f32 %v127, 0.0
  %v145 = vmax.f32 %v130, 0.0
  %v146 = vmax.f32 %v135, 0.0
  %v147 = vpack.c.bf16 %v141, %v140
  %v148 = vpack.c.bf16 %v143, %v142
  %v149 = vpack.c.bf16 %v145, %v144
  %v150 = vpack.c.bf16 %v146, %v146
  %v155 = vunpack.c.l.b16 %v147
  %v156 = vunpack.c.h.b16 %v147
  %v157 = vunpack.c.l.b16 %v148
  %v158 = vunpack.c.h.b16 %v148
  %v159 = vunpack.c.l.b16 %v149
  %v160 = vunpack.c.h.b16 %v149
  %v161 = vunpack.c.l.b16 %v150
  %v162 = vpack.c.b16 %v155, %v155
  %v163 = vpack.c.b16 %v156, %v156
  %v164 = vpack.c.b16 %v157, %v157
  %v165 = vpack.c.b16 %v158, %v158
  %v166 = vpack.c.b16 %v159, %v159
  %v167 = vpack.c.b16 %v160, %v160
  %v168 = vpack.c.b16 %v161, %v161
  %vm176 = vcmask 158720
  %177 = vst.msk [vmem:[%s3] sm:$0xf] %vm176, %v162
  %178 = vst.msk [vmem:[%s3 + $0x4] sm:$0xf] %vm176, %v163
  %179 = vst.msk [vmem:[%s3 + $0x8] sm:$0xf] %vm176, %v164
  %180 = vst.msk [vmem:[%s3 + $0xc] sm:$0xf] %vm176, %v165
  %181 = vst.msk [vmem:[%s3 + $0x10] sm:$0xf] %vm176, %v166
  %182 = vst.msk [vmem:[%s3 + $0x14] sm:$0xf] %vm176, %v167
  %vm183 = vcmask 155648
  %184 = vst.msk [vmem:[%s3 + $0x18] sm:$0x1] %vm183, %v168
  // Predicated region
  $region14: #{tpu_custom_call.1} parent=0 // pred_check
    _
  $region15: #{tpu_custom_call.1} parent=0 // pred_check_branch
    %186 = sbr.rel (0) target = $region17
  $region16: #{tpu_custom_call.1} parent=0 // pred_region
    _
  $region17: #{tpu_custom_call.1} parent=0 // pred_fallthru
    _
  // Predicated region
  $region18: #{tpu_custom_call.1} parent=0 // pred_check
    _
  $region19: #{tpu_custom_call.1} parent=0 // pred_check_branch
    %188 = sbr.rel (0) target = $region21
  $region20: #{tpu_custom_call.1} parent=0 // pred_region
    _
  $region21: #{tpu_custom_call.1} parent=0 // pred_fallthru
    _

</llo_original>
